<compile_context>
chip_gen: v7x
topology: tpu7x:2x2x1
jax: 0.10.0
libtpu: 0.0.40
codegen_flags: <defaults>
</compile_context>

<pallas_src>
import jax
import jax.numpy as jnp
from jax.experimental import pallas as pl
from jax.experimental.pallas import tpu as pltpu


def _round_up(n: int, m: int) -> int:
    return ((n + m - 1) // m) * m


def _round_down(n: int, m: int) -> int:
    return (n // m) * m


def _fused_heads_kernel(x_ref, w_ref, b_ref, mean_ref, logvar_ref):
    # One MXU matmul for both heads (f32 accumulate), one broadcast bias add
    # on the VPU, then two stores. Splitting the fused result is a static
    # slice of a register value -> no extra HBM traffic.
    y = jnp.dot(x_ref[...], w_ref[...], preferred_element_type=jnp.float32)
    y = y + b_ref[...].astype(jnp.float32)
    out_f = y.shape[-1] // 2
    mean_ref[...] = y[:, :out_f].astype(mean_ref.dtype)
    logvar_ref[...] = y[:, out_f:].astype(logvar_ref.dtype)


def fuse_head_params(w_mean, b_mean, w_logvar, b_logvar, *, dtype=None):
    """Fuse the two heads' params ONCE (at init / param load), not per call.

    w_*: [IN, OUT] (transposed vs PyTorch), b_*: [1, OUT] or [OUT].
    Returns (w_fused [IN, 2*OUT], b_fused [1, 2*OUT]).
    """
    w_fused = jnp.concatenate([w_mean, w_logvar], axis=1)
    b_fused = jnp.concatenate(
        [jnp.reshape(b_mean, (1, -1)), jnp.reshape(b_logvar, (1, -1))], axis=1)
    if dtype is not None:
        w_fused = w_fused.astype(dtype)
        b_fused = b_fused.astype(dtype)
    return w_fused, b_fused


def _pick_tile_b(B, IN, OUT, tile_b, in_itemsize, out_itemsize, vmem_budget_bytes):
    """Pick the batch tile: as big as VMEM allows, but keep >=2 grid steps."""
    N = 2 * OUT
    # Sublane granularity: f32 -> 8 rows, bf16 -> 16 rows (packed sublanes).
    sub = 16 if min(in_itemsize, out_itemsize) < 4 else 8
    if B <= sub:
        return B  # single full-batch block (full-dim block, no divisibility rule)

    # VMEM-resident: fused weight + bias (bias row pads to an (8,128) tile).
    resident = in_itemsize * IN * N + in_itemsize * 8 * _round_up(N, 128)
    # Per-row, double-buffered: x tile + two output tiles.
    per_row = 2 * (in_itemsize * IN + out_itemsize * N)
    vmem_rows = max(sub, _round_down(max(0, vmem_budget_bytes - resident) // per_row, sub))

    t = min(tile_b, vmem_rows, _round_up(B, sub))
    # Guarantee >=2 grid steps (v7x megacore split + DMA/compute overlap).
    t = min(t, _round_up(pl.cdiv(B, 2), sub))
    # Prefer ~8 grid steps once each step still moves >=512 rows (tile sweeps
    # show >=512-row tiles needed to approach the HBM roofline; below that the
    # ~0.35us per-grid-step overhead dominates).
    if B >= 8 * 512:
        t = min(t, _round_up(pl.cdiv(B, 8), sub))
    return max(sub, t)


def mean_and_logvar(x, w_fused, b_fused, *, tile_b: int = 4096, out_dtype=None,
                    vmem_budget_bytes: int = 12 * 1024 * 1024):
    """Pallas implementation of MeanAndLogvar(nn.Linear) forward.

    x:        [B, IN]
    w_fused:  [IN, 2*OUT]  (from fuse_head_params, pre-fused at init)
    b_fused:  [1, 2*OUT]
    returns:  (mean [B, OUT], logvar [B, OUT])
    """
    B, IN = x.shape
    N = w_fused.shape[1]
    assert N % 2 == 0, "fused weight must hold both heads"
    OUT = N // 2
    if out_dtype is None:
        out_dtype = x.dtype

    in_itemsize = jnp.dtype(x.dtype).itemsize
    out_itemsize = jnp.dtype(out_dtype).itemsize
    TILE_B = _pick_tile_b(B, IN, OUT, tile_b, in_itemsize, out_itemsize,
                          vmem_budget_bytes)
    grid = (pl.cdiv(B, TILE_B),)  # ragged last tile handled by Pallas (no x pad copy)

    cost = pl.CostEstimate(
        flops=2 * B * IN * N,
        transcendentals=0,
        bytes_accessed=(in_itemsize * B * IN
                        + jnp.dtype(w_fused.dtype).itemsize * (IN * N + N)
                        + out_itemsize * B * N),
    )

    mean, logvar = pl.pallas_call(
        _fused_heads_kernel,
        out_shape=(jax.ShapeDtypeStruct((B, OUT), out_dtype),
                   jax.ShapeDtypeStruct((B, OUT), out_dtype)),
        grid_spec=pltpu.PrefetchScalarGridSpec(
            num_scalar_prefetch=0,
            grid=grid,
            in_specs=[
                pl.BlockSpec((TILE_B, IN), lambda i: (i, 0)),  # x tile (pipelined)
                pl.BlockSpec((IN, N), lambda i: (0, 0)),       # fused W (VMEM-resident)
                pl.BlockSpec((1, N), lambda i: (0, 0)),        # fused bias (VMEM-resident)
            ],
            out_specs=[
                pl.BlockSpec((TILE_B, OUT), lambda i: (i, 0)),  # mean
                pl.BlockSpec((TILE_B, OUT), lambda i: (i, 0)),  # logvar
            ],
        ),
        compiler_params=pltpu.CompilerParams(
            # Batch axis is embarrassingly parallel -> both v7x TCs take half
            # the grid; harmless no-op on v5e/v6e.
            dimension_semantics=("parallel",),
        ),
        cost_estimate=cost,
    )(x, w_fused, b_fused)
    return mean, logvar


def init_linear_params(key, in_features, out_features):
    """Deterministic init mimicking torch.nn.Linear default (uniform +-1/sqrt(fan_in))."""
    k_w, k_b = jax.random.split(key)
    bound = 1.0 / jnp.sqrt(jnp.float32(in_features))
    # PyTorch weight is [OUT, IN]; we store the transpose [IN, OUT].
    w = jax.random.uniform(k_w, (in_features, out_features),
                           minval=-bound, maxval=bound, dtype=jnp.float32)
    b = jax.random.uniform(k_b, (1, out_features),
                           minval=-bound, maxval=bound, dtype=jnp.float32)
    return w, b


if __name__ == "__main__":
    key = jax.random.PRNGKey(0)
    k_x, k_layer, k_layer2, k_x2, k_x3 = jax.random.split(key, 5)

    IN, OUT = 32, 32
    w_mean, b_mean = init_linear_params(k_layer, IN, OUT)

    # ---- Test 1: tiny shapes, heads tied at init (deepcopy semantics). ----
    B = 8
    x = jax.random.normal(k_x, (B, IN), dtype=jnp.float32)
    w_logvar, b_logvar = w_mean, b_mean  # deepcopy -> identical initial params
    w_f, b_f = fuse_head_params(w_mean, b_mean, w_logvar, b_logvar)  # init-time fuse

    mean, logvar = mean_and_logvar(x, w_f, b_f)
    jax.block_until_ready((mean, logvar))

    ref_mean = x @ w_mean + b_mean
    ref_logvar = x @ w_logvar + b_logvar
    assert mean.shape == (B, OUT) and logvar.shape == (B, OUT)
    assert jnp.allclose(mean, ref_mean, atol=1e-5, rtol=1e-5)
    assert jnp.allclose(logvar, ref_logvar, atol=1e-5, rtol=1e-5)

    # ---- Test 2: diverged heads + ragged batch (exercises grid + masked tail). ----
    B2 = 300
    x2 = jax.random.normal(k_x2, (B2, IN), dtype=jnp.float32)
    w_logvar2, b_logvar2 = init_linear_params(k_layer2, IN, OUT)  # trained apart
    w_f2, b_f2 = fuse_head_params(w_mean, b_mean, w_logvar2, b_logvar2)

    mean2, logvar2 = mean_and_logvar(x2, w_f2, b_f2)
    jax.block_until_ready((mean2, logvar2))

    ref_mean2 = x2 @ w_mean + b_mean
    ref_logvar2 = x2 @ w_logvar2 + b_logvar2
    assert mean2.shape == (B2, OUT) and logvar2.shape == (B2, OUT)
    assert jnp.allclose(mean2, ref_mean2, atol=1e-5, rtol=1e-5)
    assert jnp.allclose(logvar2, ref_logvar2, atol=1e-5, rtol=1e-5)

    # ---- Test 3: bf16 at the call boundary (v6e/v7x HBM-byte saving path). ----
    B3 = 256
    x3 = jax.random.normal(k_x3, (B3, IN), dtype=jnp.float32)
    w_f3, b_f3 = fuse_head_params(w_mean, b_mean, w_logvar2, b_logvar2,
                                  dtype=jnp.bfloat16)
    mean3, logvar3 = mean_and_logvar(x3.astype(jnp.bfloat16), w_f3, b_f3)
    jax.block_until_ready((mean3, logvar3))

    ref_mean3 = x3 @ w_mean + b_mean
    ref_logvar3 = x3 @ w_logvar2 + b_logvar2
    assert mean3.dtype == jnp.bfloat16 and logvar3.dtype == jnp.bfloat16
    assert jnp.allclose(mean3.astype(jnp.float32), ref_mean3, atol=6e-2, rtol=6e-2)
    assert jnp.allclose(logvar3.astype(jnp.float32), ref_logvar3, atol=6e-2, rtol=6e-2)

    print("KERNEL_OK")
</pallas_src>

<mosaic_0001>
module attributes {stable_mosaic.version = 11 : i64} {
  func.func @_fused_heads_kernel(%arg0: i32, %arg1: memref<8x32xf32, #tpu.memory_space<vmem>>, %arg2: memref<32x64xf32, #tpu.memory_space<vmem>>, %arg3: memref<1x64xf32, #tpu.memory_space<vmem>>, %arg4: memref<8x32xf32, #tpu.memory_space<vmem>>, %arg5: memref<8x32xf32, #tpu.memory_space<vmem>>) attributes {dimension_semantics = [#tpu.dimension_semantics<parallel>], iteration_bounds = array<i64: 1>, scalar_prefetch = 0 : i64, scratch_operands = 0 : i64, tpu.core_type = #tpu.core_type<tc>, window_params = [{transform_indices = @transform_0, window_bounds = array<i64: 8, 32>}, {pipeline_mode = #tpu.pipeline_mode<synchronous>, transform_indices = @transform_1, window_bounds = array<i64: 32, 64>}, {pipeline_mode = #tpu.pipeline_mode<synchronous>, transform_indices = @transform_2, window_bounds = array<i64: 1, 64>}, {transform_indices = @transform_3, window_bounds = array<i64: 8, 32>}, {transform_indices = @transform_4, window_bounds = array<i64: 8, 32>}]} {
    %c0 = arith.constant 0 : index
    %c0_0 = arith.constant 0 : index
    %0 = vector.load %arg1[%c0, %c0_0] : memref<8x32xf32, #tpu.memory_space<vmem>>, vector<8x32xf32>
    %c0_1 = arith.constant 0 : index
    %c0_2 = arith.constant 0 : index
    %1 = vector.load %arg2[%c0_1, %c0_2] : memref<32x64xf32, #tpu.memory_space<vmem>>, vector<32x64xf32>
    %cst = arith.constant dense<0.000000e+00> : vector<8x64xf32>
    %2 = tpu.matmul %0, %1, %cst {dimension_numbers = #tpu.dot_dimension_numbers<[1], [0], [0], [1], [0, 0, 1, 1], [], []>} : vector<8x32xf32>, vector<32x64xf32>, vector<8x64xf32> -> vector<8x64xf32>
    %c0_3 = arith.constant 0 : index
    %c0_4 = arith.constant 0 : index
    %3 = vector.load %arg3[%c0_3, %c0_4] : memref<1x64xf32, #tpu.memory_space<vmem>>, vector<1x64xf32>
    %4 = vector.broadcast %3 : vector<1x64xf32> to vector<8x64xf32>
    %5 = arith.addf %2, %4 : vector<8x64xf32>
    %6 = vector.extract_strided_slice %5 {offsets = [0, 0], sizes = [8, 32], strides = [1, 1]} : vector<8x64xf32> to vector<8x32xf32>
    %c0_5 = arith.constant 0 : index
    %c0_6 = arith.constant 0 : index
    %7 = vector.load %arg4[%c0_5, %c0_6] : memref<8x32xf32, #tpu.memory_space<vmem>>, vector<8x32xf32>
    tpu.vector_store %arg4[%c0_5, %c0_6], %6 {strides = array<i32>} : memref<8x32xf32, #tpu.memory_space<vmem>>, vector<8x32xf32>,
    %8 = vector.extract_strided_slice %5 {offsets = [0, 32], sizes = [8, 32], strides = [1, 1]} : vector<8x64xf32> to vector<8x32xf32>
    %c0_7 = arith.constant 0 : index
    %c0_8 = arith.constant 0 : index
    %9 = vector.load %arg5[%c0_7, %c0_8] : memref<8x32xf32, #tpu.memory_space<vmem>>, vector<8x32xf32>
    tpu.vector_store %arg5[%c0_7, %c0_8], %8 {strides = array<i32>} : memref<8x32xf32, #tpu.memory_space<vmem>>, vector<8x32xf32>,
    return
  }
  func.func @transform_0(%arg0: i32) -> (i32, i32) {
    %c0_i32 = arith.constant 0 : i32
    %c0_i32_0 = arith.constant 0 : i32
    return %arg0, %c0_i32 : i32, i32
  }
  func.func @transform_1(%arg0: i32) -> (i32, i32) {
    %c0_i32 = arith.constant 0 : i32
    %c0_i32_0 = arith.constant 0 : i32
    %c0_i32_1 = arith.constant 0 : i32
    return %c0_i32, %c0_i32_0 : i32, i32
  }
  func.func @transform_2(%arg0: i32) -> (i32, i32) {
    %c0_i32 = arith.constant 0 : i32
    %c0_i32_0 = arith.constant 0 : i32
    %c0_i32_1 = arith.constant 0 : i32
    return %c0_i32, %c0_i32_0 : i32, i32
  }
  func.func @transform_3(%arg0: i32) -> (i32, i32) {
    %c0_i32 = arith.constant 0 : i32
    %c0_i32_0 = arith.constant 0 : i32
    return %arg0, %c0_i32 : i32, i32
  }
  func.func @transform_4(%arg0: i32) -> (i32, i32) {
    %c0_i32 = arith.constant 0 : i32
    %c0_i32_0 = arith.constant 0 : i32
    return %arg0, %c0_i32 : i32, i32
  }
}

</mosaic_0001>

<llo_original>
// kernel: tpu_custom_call.1
$region0: #{tpu_custom_call.1}
  #allocation0 [shape = 'u32[]', space=smem, size = 0x4, offset = 0x4, fixed_abs, tag = 'smem constant byte address 0x4 - core index']
  #allocation1 [shape = 'u32[144,128]{1,0:T(1,128)}', space=vmem, size = 0x12000, scoped, tag = 'internal scratch']
  %s0 = inlined_call_operand.hbm [shape: f32[8,32], index: 0, kind: input, shape index: {}]
  %s1 = inlined_call_operand.hbm [shape: f32[32,64], index: 1, kind: input, shape index: {}]
  %s2 = inlined_call_operand.vmem [shape: f32[1,64], index: 2, kind: input, shape index: {}]
  %s3 = inlined_call_operand.hbm [shape: f32[8,32], index: 3, kind: output, shape index: {0}]
  %s4 = inlined_call_operand.hbm [shape: f32[8,32], index: 4, kind: output, shape index: {1}]
  %5 = xla_tuple %s3, %s4
  %s6 = sld [smem:[#allocation0]]
  $region38: #{tpu_custom_call.1} parent=0
    _
  %s8 = ssub.s32 1, %s6
  %s9 = scalar_select 0, %s8, %s6
  $region1: #{tpu_custom_call.1} parent=0
    #allocation2 [shape = 'u8[4096]{0}', space=vmem, size = 0x1000, scoped, tag = 'input window, operand 0, single buffered']
    #allocation3 [shape = 's32[1]{0}', space=sflag, size = 0x4, scoped, tag = 'scoped memory for tpu_custom_call.1']
    #allocation4 [shape = 's32[1]{0}', space=sflag, size = 0x4, scoped, tag = 'scoped memory for tpu_custom_call.1']
    #allocation5 [shape = 'u8[16384]{0}', space=vmem, size = 0x4000, scoped, tag = 'input window, operand 1, single buffered']
    #allocation6 [shape = 's32[1]{0}', space=sflag, size = 0x4, scoped, tag = 'scoped memory for tpu_custom_call.1']
    #allocation7 [shape = 'u8[4096]{0}', space=vmem, size = 0x1000, scoped, tag = 'output window, operand 0, single buffered']
    #allocation8 [shape = 'u8[4096]{0}', space=vmem, size = 0x1000, scoped, tag = 'output window, operand 1, single buffered']
    #allocation9 [shape = 's32[1]{0}', space=sflag, size = 0x4, scoped, tag = 'scoped memory for tpu_custom_call.1']
    %10 = vsyncpa [#allocation3], 0
    %11 = vsyncpa [#allocation6], 0
    %12 = vsyncpa [#allocation4], 0
    %13 = vsyncpa [#allocation9], 0
    // Predicated region
    $region2: #{tpu_custom_call.1} parent=1 // pred_check
      _
    $region3: #{tpu_custom_call.1} parent=1 // pred_check_branch
      %15 = sbr.rel (0) target = $region5
    $region4: #{tpu_custom_call.1} parent=1 // pred_region
      %s17 = ssub.s32 128, 128
      %18 = vsyncadd [#allocation3], %s17
      %s20 = sshll.u32 [#allocation2], 4
      %s21 = int_to_ptr.vmem [resolvable:$true] %s20
      %23 = dma.hbm_to_vmem [thread:$0]  %s0, 128, %s21, [#allocation3]
    $region5: #{tpu_custom_call.1} parent=1 // pred_fallthru
      _
    // Predicated region
    $region6: #{tpu_custom_call.1} parent=1 // pred_check
      _
    $region7: #{tpu_custom_call.1} parent=1 // pred_check_branch
      %25 = sbr.rel (0) target = $region9
    $region8: #{tpu_custom_call.1} parent=1 // pred_region
      %s27 = ssub.s32 512, 512
      %28 = vsyncadd [#allocation6], %s27
      %s29 = sshll.u32 [#allocation5], 4
      %s30 = int_to_ptr.vmem [resolvable:$true] %s29
      %35 = dma.hbm_to_vmem [thread:$0]  %s1, 512, %s30, [#allocation6], 128, 128, 8
    $region9: #{tpu_custom_call.1} parent=1 // pred_fallthru
      _
    // Predicated region
    $region10: #{tpu_custom_call.1} parent=1 // pred_check
      _
    $region11: #{tpu_custom_call.1} parent=1 // pred_check_branch
      %37 = sbr.rel (0) target = $region13
    $region12: #{tpu_custom_call.1} parent=1 // pred_region
      _
    $region13: #{tpu_custom_call.1} parent=1 // pred_fallthru
      _
    // Predicated region
    $region14: #{tpu_custom_call.1} parent=1 // pred_check
      _
    $region15: #{tpu_custom_call.1} parent=1 // pred_check_branch
      %39 = sbr.rel (0) target = $region17
    $region16: #{tpu_custom_call.1} parent=1 // pred_region
      %40 = dma.done [#allocation3], 128
    $region17: #{tpu_custom_call.1} parent=1 // pred_fallthru
      _
    // Predicated region
    $region18: #{tpu_custom_call.1} parent=1 // pred_check
      _
    $region19: #{tpu_custom_call.1} parent=1 // pred_check_branch
      %42 = sbr.rel (0) target = $region21
    $region20: #{tpu_custom_call.1} parent=1 // pred_region
      %43 = dma.done [#allocation6], 512
    $region21: #{tpu_custom_call.1} parent=1 // pred_fallthru
      _
    %v44 = vld [vmem:[#allocation2] sm:$0xff]
    %v45 = vld [vmem:[#allocation5] sm:$0xff]
    %v46 = vld [vmem:[#allocation5 + $0x8] sm:$0xff]
    %v47 = vld [vmem:[#allocation5 + $0x10] sm:$0xff]
    %v48 = vld [vmem:[#allocation5 + $0x18] sm:$0xff]
    %v49 = vld [vmem:[%s2] sm:$0x1]
    %v51 = vlaneseq
    %v52 = vshrl.u32 %v51, 7
    %v53 = vsub.s32 0, %v52
    %v54 = vrot.slane %v49, %v53
    %vm56 = vcmask 261120
    %v58 = vsel %vm56, %v44, 0
    %60 = vmatprep.subr.mxu0 0.0
    %61 = vmatpush1.msra.mxu0 %v45
    %62 = vmatprep.subr.mxu0 0.0
    %63 = vmatpush1.msra.mxu0 %v46
    %64 = vmatprep.subr.mxu0 0.0
    %65 = vmatpush1.msra.mxu0 %v47
    %66 = vmatprep.subr.mxu0 0.0
    %67 = vmatpush1.msra.mxu0 %v48
    %68 = vmatprep.subr.mxu0 0.0
    %69 = vmatpush1.msra.mxu0 0.0
    %70 = vmatprep.subr.mxu0 0.0
    %71 = vmatpush1.msra.mxu0 0.0
    %72 = vmatprep.subr.mxu0 0.0
    %73 = vmatpush1.msra.mxu0 0.0
    %74 = vmatprep.subr.mxu0 0.0
    %75 = vmatpush1.msra.mxu0 0.0
    %76 = vmatprep.subr.mxu0 0.0
    %77 = vmatpush1.msra.mxu0 0.0
    %78 = vmatprep.subr.mxu0 0.0
    %79 = vmatpush1.msra.mxu0 0.0
    %80 = vmatprep.subr.mxu0 0.0
    %81 = vmatpush1.msra.mxu0 0.0
    %82 = vmatprep.subr.mxu0 0.0
    %83 = vmatpush1.msra.mxu0 0.0
    %84 = vmatprep.subr.mxu0 0.0
    %85 = vmatpush1.msra.mxu0 0.0
    %86 = vmatprep.subr.mxu0 0.0
    %87 = vmatpush1.msra.mxu0 0.0
    %88 = vmatprep.subr.mxu0 0.0
    %89 = vmatpush1.msra.mxu0 0.0
    %90 = vmatprep.subr.mxu0 0.0
    %91 = vmatpush1.msra.mxu0 0.0
    %92 = vmatprep.subr.mxu0 0.0
    %93 = vmatpush1.msra.mxu0 0.0
    %94 = vmatprep.subr.mxu0 0.0
    %95 = vmatpush1.msra.mxu0 0.0
    %96 = vmatprep.subr.mxu0 0.0
    %97 = vmatpush1.msra.mxu0 0.0
    %98 = vmatprep.subr.mxu0 0.0
    %99 = vmatpush1.msra.mxu0 0.0
    %100 = vmatprep.subr.mxu0 0.0
    %101 = vmatpush1.msra.mxu0 0.0
    %102 = vmatprep.subr.mxu0 0.0
    %103 = vmatpush1.msra.mxu0 0.0
    %104 = vmatprep.subr.mxu0 0.0
    %105 = vmatpush1.msra.mxu0 0.0
    %106 = vmatprep.subr.mxu0 0.0
    %107 = vmatpush1.msra.mxu0 0.0
    %108 = vmatprep.subr.mxu0 0.0
    %109 = vmatpush1.msra.mxu0 0.0
    %110 = vmatprep.subr.mxu0 0.0
    %111 = vmatpush1.msra.mxu0 0.0
    %112 = vmatprep.subr.mxu0 0.0
    %113 = vmatpush1.msra.mxu0 0.0
    %114 = vmatprep.subr.mxu0 0.0
    %115 = vmatpush1.msra.mxu0 0.0
    %116 = vmatprep.subr.mxu0 0.0
    %117 = vmatpush1.msra.mxu0 0.0
    %118 = vmatprep.subr.mxu0 0.0
    %119 = vmatpush1.msra.mxu0 0.0
    %120 = vmatprep.subr.mxu0 0.0
    %121 = vmatpush1.msra.mxu0 0.0
    %122 = vmatprep.subr.mxu0 0.0
    %123 = vmatpush1.msra.mxu0 0.0
    %124 = vmatprep.mubr.f32.mxu0 0.0
    %125 = vmatmul.mubr.f32.gmra.mrb[0].mxu0 %v58
    %v126 = vpop.f32.mrb[0].mxu0
    %v127 = vadd.f32 %v54, %v126
    %v128 = vpop.f32.mrb[0].mxu0
    %129 = vdwg.mxu0
    %130 = vst.msk [vmem:[#allocation7] sm:$0xff] %vm56, %v127
    %132 = vrot.lane.b32.xlu0 %v127, 96
    %v133 = vpop.permute.xlu0 %132
    %135 = vst.msk [vmem:[#allocation8] sm:$0xff] %vm56, %v133
    // Predicated region
    $region22: #{tpu_custom_call.1} parent=1 // pred_check
      _
    $region23: #{tpu_custom_call.1} parent=1 // pred_check_branch
      %137 = sbr.rel (0) target = $region25
    $region24: #{tpu_custom_call.1} parent=1 // pred_region
      %s139 = ssub.s32 128, 128
      %140 = vsyncadd [#allocation4], %s139
      %s142 = sshll.u32 [#allocation7], 4
      %s143 = int_to_ptr.vmem [resolvable:$true] %s142
      %145 = dma.vmem_to_hbm [thread:$0]  %s143, 128, %s3, [#allocation4]
    $region25: #{tpu_custom_call.1} parent=1 // pred_fallthru
      _
    // Predicated region
    $region26: #{tpu_custom_call.1} parent=1 // pred_check
      _
    $region27: #{tpu_custom_call.1} parent=1 // pred_check_branch
      %147 = sbr.rel (0) target = $region29
    $region28: #{tpu_custom_call.1} parent=1 // pred_region
      %s149 = ssub.s32 128, 128
      %150 = vsyncadd [#allocation9], %s149
      %s152 = sshll.u32 [#allocation8], 4
      %s153 = int_to_ptr.vmem [resolvable:$true] %s152
      %155 = dma.vmem_to_hbm [thread:$0]  %s153, 128, %s4, [#allocation9]
    $region29: #{tpu_custom_call.1} parent=1 // pred_fallthru
      _
    // Predicated region
    $region30: #{tpu_custom_call.1} parent=1 // pred_check
      _
    $region31: #{tpu_custom_call.1} parent=1 // pred_check_branch
      %157 = sbr.rel (0) target = $region33
    $region32: #{tpu_custom_call.1} parent=1 // pred_region
      %158 = dma.done [#allocation4], 128
    $region33: #{tpu_custom_call.1} parent=1 // pred_fallthru
      _
    // Predicated region
    $region34: #{tpu_custom_call.1} parent=1 // pred_check
      _
    $region35: #{tpu_custom_call.1} parent=1 // pred_check_branch
      %160 = sbr.rel (0) target = $region37
    $region36: #{tpu_custom_call.1} parent=1 // pred_region
      %161 = dma.done [#allocation9], 128
    $region37: #{tpu_custom_call.1} parent=1 // pred_fallthru
      _
    %162 = vsyncpa [#allocation3], 1
    %163 = vsyncpa [#allocation6], 1
    %164 = vsyncpa [#allocation4], 1
    %165 = vsyncpa [#allocation9], 1

</llo_original>
